<compile_context>
chip_gen: v5e
topology: v5e:2x2
jax: 0.10.0
libtpu: 0.0.40
codegen_flags: <defaults>
</compile_context>

<pallas_src>
import functools
import math

import jax
import jax.numpy as jnp
from jax.experimental import pallas as pl
from jax.experimental.pallas import tpu as pltpu


_SMALL_K_UNROLL = 16  # on v5e/v6e, use VPU broadcast-MACs below this K


def _round_up(x, m):
    return ((x + m - 1) // m) * m


def _largest_divisor_multiple(n, mult, cap):
    """Largest d with d % mult == 0, n % d == 0, d <= cap (None if none exists)."""
    best = None
    hi = min(cap, n)
    for d in range(mult, hi + 1, mult):
        if n % d == 0:
            best = d
    return best


def _tpu_generation():
    """Best-effort TPU generation from device_kind; None if undetermined."""
    try:
        kind = jax.devices()[0].device_kind.lower()
    except Exception:
        return None
    for g in (7, 6, 5, 4, 3):
        if (f"v{g}" in kind) or (f"tpu{g}" in kind):
            return g
    return None


def _plan(M, K, E, gen):
    """Pick (tile_m, tile_e, M_pad, vmem_limit_bytes) per TPU generation."""
    if gen in (4, 5, 6):
        # 128 MiB physical VMEM: raise the scoped limit so big tiles double-buffer.
        vmem_limit = 100 * 1024 * 1024
        out_tile_cap = 24 * 1024 * 1024
    else:
        # v7x (64 MiB VMEM) or unknown: stay conservative.
        vmem_limit = 48 * 1024 * 1024
        out_tile_cap = 10 * 1024 * 1024

    # ---- E (lane) tiling: never pad E. ----
    min_rows = 512  # want at least this many M rows per tile before we bother tiling E
    if (E * 4 * min(min_rows, max(M, 8)) <= out_tile_cap) or (E % 128 != 0):
        tile_e = E  # full extent: legal for any E (block dim == array dim), lane-dense store
    else:
        cap_e = max(128, out_tile_cap // (4 * min_rows))
        d = _largest_divisor_multiple(E, 128, cap_e)
        tile_e = d if d is not None else E

    # ---- M (sublane) tiling: avoid the pad-then-slice output pass whenever possible. ----
    cap_m_rows = max(8, (out_tile_cap // (4 * tile_e)) // 8 * 8)
    if M <= cap_m_rows:
        tile_m, m_pad = M, M  # single full-extent block: no padding, no final slice
    else:
        d = _largest_divisor_multiple(M, 8, cap_m_rows) if (M % 8 == 0) else None
        if d is not None and d >= max(256, cap_m_rows // 4):
            tile_m, m_pad = d, M  # exact tiling, no padding, no slice
        else:
            tile_m = cap_m_rows  # rare fallback: pad M (cheap, K-wide input) + slice output
            m_pad = _round_up(M, tile_m)

    return tile_m, tile_e, m_pad, vmem_limit


def _graph_embedding_kernel(x_ref, emb_ref, o_ref, *, use_mxu):
    # x_ref:   (tile_m, K)       rows of the flattened (B*S, K) input
    # emb_ref: (K, tile_e)       E-slab (or the whole resident embedding)
    # o_ref:   (tile_m, tile_e)  lane-dense output tile
    K = x_ref.shape[-1]
    if use_mxu:
        # MXU path: contraction on the otherwise-idle vmatmul slot, f32 accumulation.
        o_ref[...] = jax.lax.dot_general(
            x_ref[...], emb_ref[...],
            dimension_numbers=(((1,), (0,)), ((), ())),
            preferred_element_type=jnp.float32,
        ).astype(o_ref.dtype)
    else:
        # Unrolled VPU broadcast-MAC (small K, HBM-bound chips); single store at the end
        # so the store slot feeds the output DMA rather than spill traffic.
        x = x_ref[...]
        emb = emb_ref[...]
        acc = x[:, 0:1].astype(jnp.float32) * emb[0:1, :].astype(jnp.float32)
        for k in range(1, K):
            acc = acc + x[:, k:k + 1].astype(jnp.float32) * emb[k:k + 1, :].astype(jnp.float32)
        o_ref[...] = acc.astype(o_ref.dtype)


def graph_embedding(inputs, embedding):
    """inputs: (B, K, S), embedding: (K, E) -> (B, S, E) float32 (matches torch .float())."""
    B, K, S = inputs.shape
    K2, E = embedding.shape
    assert K == K2, "input_size mismatch between inputs and embedding"

    M = B * S
    gen = _tpu_generation()
    tile_m, tile_e, m_pad, vmem_limit = _plan(M, K, E, gen)

    # MXU on v7x / unknown (and always for large K); VPU MAC on v5e/v6e for tiny K.
    use_mxu = (gen is None) or (gen >= 7) or (K > _SMALL_K_UNROLL)

    # Layout plumbing: (B, K, S) -> (B, S, K) -> (M, K) so the kernel never transposes.
    x2d = jnp.transpose(inputs, (0, 2, 1)).reshape(M, K)
    if m_pad != M:
        x2d = jnp.pad(x2d, ((0, m_pad - M), (0, 0)))

    m_tiles = m_pad // tile_m
    e_tiles = E // tile_e if tile_e != E else 1

    kernel = functools.partial(_graph_embedding_kernel, use_mxu=use_mxu)

    if e_tiles == 1:
        # 1-D grid over M: whole embedding VMEM-resident (constant block index), full-E
        # lane-dense output stores, minimal grid-step count.
        grid = (m_tiles,)
        in_specs = [
            pl.BlockSpec((tile_m, K), lambda i: (i, 0)),
            pl.BlockSpec((K, E), lambda i: (0, 0)),
        ]
        out_specs = pl.BlockSpec((tile_m, E), lambda i: (i, 0))
        dim_sem = ("parallel",)
    else:
        # E is the INNERMOST grid axis so the x block index (i, 0) is constant across
        # consecutive steps and Pallas skips re-fetching it.  Do not swap grid order.
        grid = (m_tiles, e_tiles)
        in_specs = [
            pl.BlockSpec((tile_m, K), lambda i, j: (i, 0)),
            pl.BlockSpec((K, tile_e), lambda i, j: (0, j)),
        ]
        out_specs = pl.BlockSpec((tile_m, tile_e), lambda i, j: (i, j))
        dim_sem = ("parallel", "parallel")

    out2d = pl.pallas_call(
        kernel,
        out_shape=jax.ShapeDtypeStruct((m_pad, E), jnp.float32),
        grid_spec=pltpu.PrefetchScalarGridSpec(
            num_scalar_prefetch=0,
            grid=grid,
            in_specs=in_specs,
            out_specs=out_specs,
        ),
        compiler_params=pltpu.CompilerParams(
            dimension_semantics=dim_sem,
            vmem_limit_bytes=vmem_limit,
        ),
    )(x2d, embedding)

    if m_pad != M:
        out2d = out2d[:M, :]
    return out2d.reshape(B, S, E)


if __name__ == "__main__":
    # Shapes implied by the module's forward:
    #   batch=2, input_size=4, seq_len=8, embedding_size=32
    B, K, S, E = 2, 4, 8, 32

    key = jax.random.PRNGKey(0)
    k_in, k_emb = jax.random.split(key)

    # inputs: (batch, input_size, seq_len)
    x = jax.random.normal(k_in, (B, K, S), dtype=jnp.float32)

    # Parameter init matching nn.Parameter.uniform_(-1/sqrt(E), 1/sqrt(E))
    bound = 1.0 / math.sqrt(E)
    embedding = jax.random.uniform(
        k_emb, (K, E), dtype=jnp.float32, minval=-bound, maxval=bound
    )

    out = graph_embedding(x, embedding)
    out = jax.block_until_ready(out)

    # Reference: out[b, s, e] = sum_k x[b, k, s] * embedding[k, e]
    ref = jnp.einsum("bks,ke->bse", x, embedding)
    assert out.shape == (B, S, E)
    assert out.dtype == jnp.float32
    assert jnp.allclose(out, ref, atol=1e-5, rtol=1e-5)

    print("KERNEL_OK")
</pallas_src>

<mosaic_0001>
module attributes {stable_mosaic.version = 11 : i64} {
  func.func @_graph_embedding_kernel(%arg0: i32, %arg1: memref<16x4xf32, #tpu.memory_space<vmem>>, %arg2: memref<4x32xf32, #tpu.memory_space<vmem>>, %arg3: memref<16x32xf32, #tpu.memory_space<vmem>>) attributes {dimension_semantics = [#tpu.dimension_semantics<parallel>], iteration_bounds = array<i64: 1>, scalar_prefetch = 0 : i64, scratch_operands = 0 : i64, tpu.core_type = #tpu.core_type<tc>, window_params = [{transform_indices = @transform_0, window_bounds = array<i64: 16, 4>}, {pipeline_mode = #tpu.pipeline_mode<synchronous>, transform_indices = @transform_1, window_bounds = array<i64: 4, 32>}, {transform_indices = @transform_2, window_bounds = array<i64: 16, 32>}]} {
    %c0 = arith.constant 0 : index
    %c0_0 = arith.constant 0 : index
    %0 = vector.load %arg1[%c0, %c0_0] : memref<16x4xf32, #tpu.memory_space<vmem>>, vector<16x4xf32>
    %c0_1 = arith.constant 0 : index
    %c0_2 = arith.constant 0 : index
    %1 = vector.load %arg2[%c0_1, %c0_2] : memref<4x32xf32, #tpu.memory_space<vmem>>, vector<4x32xf32>
    %cst = arith.constant dense<0.000000e+00> : vector<16x32xf32>
    %2 = tpu.matmul %0, %1, %cst {dimension_numbers = #tpu.dot_dimension_numbers<[1], [0], [0], [1], [0, 0, 1, 1], [], []>} : vector<16x4xf32>, vector<4x32xf32>, vector<16x32xf32> -> vector<16x32xf32>
    %c0_3 = arith.constant 0 : index
    %c0_4 = arith.constant 0 : index
    %3 = vector.load %arg3[%c0_3, %c0_4] : memref<16x32xf32, #tpu.memory_space<vmem>>, vector<16x32xf32>
    tpu.vector_store %arg3[%c0_3, %c0_4], %2 {strides = array<i32>} : memref<16x32xf32, #tpu.memory_space<vmem>>, vector<16x32xf32>,
    return
  }
  func.func @transform_0(%arg0: i32) -> (i32, i32) {
    %c0_i32 = arith.constant 0 : i32
    %c0_i32_0 = arith.constant 0 : i32
    return %arg0, %c0_i32 : i32, i32
  }
  func.func @transform_1(%arg0: i32) -> (i32, i32) {
    %c0_i32 = arith.constant 0 : i32
    %c0_i32_0 = arith.constant 0 : i32
    %c0_i32_1 = arith.constant 0 : i32
    return %c0_i32, %c0_i32_0 : i32, i32
  }
  func.func @transform_2(%arg0: i32) -> (i32, i32) {
    %c0_i32 = arith.constant 0 : i32
    %c0_i32_0 = arith.constant 0 : i32
    return %arg0, %c0_i32 : i32, i32
  }
}

</mosaic_0001>

<llo_original>
// kernel: tpu_custom_call.1
$region0: #{tpu_custom_call.1}
  #allocation0 [shape = 'u32[]', space=smem, size = 0x4, offset = 0x4, fixed_abs, tag = 'smem constant byte address 0x4 - core index']
  #allocation1 [shape = 'u32[72,128]{1,0:T(1,128)}', space=vmem, size = 0x9000, scoped, tag = 'internal scratch']
  %s0 = inlined_call_operand.vmem [shape: f32[16,4], index: 0, kind: input, shape index: {}]
  %s1 = inlined_call_operand.vmem [shape: f32[4,32], index: 1, kind: input, shape index: {}]
  %s2 = inlined_call_operand.hbm [shape: f32[16,32], index: 2, kind: output, shape index: {}]
  %s3 = sld [smem:[#allocation0]]
  $region18: #{tpu_custom_call.1} parent=0
    _
  %s5 = ssub.s32 1, %s3
  %s6 = scalar_select 0, %s5, %s3
  $region1: #{tpu_custom_call.1} parent=0
    #allocation2 [shape = 'u8[8192]{0}', space=vmem, size = 0x2000, scoped, tag = 'output window, operand 0, single buffered']
    #allocation3 [shape = 's32[1]{0}', space=sflag, size = 0x4, scoped, tag = 'scoped memory for tpu_custom_call.1']
    %7 = vsyncpa [#allocation3], 0
    // Predicated region
    $region2: #{tpu_custom_call.1} parent=1 // pred_check
      _
    $region3: #{tpu_custom_call.1} parent=1 // pred_check_branch
      %9 = sbr.rel (0) target = $region5
    $region4: #{tpu_custom_call.1} parent=1 // pred_region
      _
    $region5: #{tpu_custom_call.1} parent=1 // pred_fallthru
      _
    // Predicated region
    $region6: #{tpu_custom_call.1} parent=1 // pred_check
      _
    $region7: #{tpu_custom_call.1} parent=1 // pred_check_branch
      %11 = sbr.rel (0) target = $region9
    $region8: #{tpu_custom_call.1} parent=1 // pred_region
      _
    $region9: #{tpu_custom_call.1} parent=1 // pred_fallthru
      _
    %v12 = vld [vmem:[%s0] sm:$0xff]
    %v13 = vld [vmem:[%s0 + $0x8] sm:$0xff]
    %v14 = vld [vmem:[%s1] sm:$0xf]
    %vm15 = vcmask 31744
    %v17 = vsel %vm15, %v12, 0
    %v20 = vsel %vm15, %v13, 0
    %vm22 = vcmask 1043456
    %v24 = vsel %vm22, %v14, 0
    %26 = vmatpush.msra.mxu0 0.0
    %27 = vmatpush.msra.mxu0 0.0
    %28 = vmatpush.msra.mxu0 0.0
    %29 = vmatpush.msra.mxu0 0.0
    %30 = vmatpush.msra.mxu0 0.0
    %31 = vmatpush.msra.mxu0 0.0
    %32 = vmatpush.msra.mxu0 0.0
    %33 = vmatpush.msra.mxu0 0.0
    %34 = vmatpush.msra.mxu0 0.0
    %35 = vmatpush.msra.mxu0 0.0
    %36 = vmatpush.msra.mxu0 0.0
    %37 = vmatpush.msra.mxu0 0.0
    %38 = vmatpush.msra.mxu0 0.0
    %39 = vmatpush.msra.mxu0 0.0
    %40 = vmatpush.msra.mxu0 0.0
    %41 = vmatpush.msra.mxu0 %v24
    %42 = vmatmul.f32.gmra.mxu0 %v17
    %v43 = vpop.f32.mrf.mxu0
    %v44 = vadd.f32 0.0, %v43
    %45 = vmatmul.f32.gmra.mxu0 %v20
    %v46 = vpop.f32.mrf.mxu0
    %v47 = vadd.f32 0.0, %v46
    %48 = vdwg.mxu0
    %vm49 = vcmask 261120
    %50 = vst.msk [vmem:[#allocation2] sm:$0xff] %vm49, %v44
    %51 = vst.msk [vmem:[#allocation2 + $0x8] sm:$0xff] %vm49, %v47
    // Predicated region
    $region10: #{tpu_custom_call.1} parent=1 // pred_check
      _
    $region11: #{tpu_custom_call.1} parent=1 // pred_check_branch
      %53 = sbr.rel (0) target = $region13
    $region12: #{tpu_custom_call.1} parent=1 // pred_region
      %55 = vsyncadd [#allocation3], 0
      %s56 = sshll.u32 [#allocation2], 4
      %s57 = int_to_ptr.vmem [resolvable:$true] %s56
      %s58 = sshll.u32 %s2, 4
      %s59 = int_to_ptr.hbm [resolvable:$true] %s58
      %64 = dma.vmem_to_hbm [thread:$0]  %s57, 256, %s59, [#allocation3], 128, 128, 8
    $region13: #{tpu_custom_call.1} parent=1 // pred_fallthru
      _
    // Predicated region
    $region14: #{tpu_custom_call.1} parent=1 // pred_check
      _
    $region15: #{tpu_custom_call.1} parent=1 // pred_check_branch
      %66 = sbr.rel (0) target = $region17
    $region16: #{tpu_custom_call.1} parent=1 // pred_region
      %68 = dma.done [#allocation3], 256
    $region17: #{tpu_custom_call.1} parent=1 // pred_fallthru
      _
    %69 = vsyncpa [#allocation3], 1

</llo_original>
